<compile_context>
chip_gen: v5e
topology: v5e:2x2
jax: 0.10.0
libtpu: 0.0.40
codegen_flags: <defaults>
</compile_context>

<pallas_src>
import functools

import jax
import jax.numpy as jnp
from jax.experimental import pallas as pl
from jax.experimental.pallas import tpu as pltpu


def _round_up(n: int, m: int) -> int:
    return ((n + m - 1) // m) * m


def _hash_u32(x):
    # lowbias32-style finalizer: cheap, portable uint32 mixing on the VPU.
    x = x ^ (x >> 16)
    x = x * jnp.uint32(0x7FEB352D)
    x = x ^ (x >> 15)
    x = x * jnp.uint32(0x846CA68B)
    x = x ^ (x >> 16)
    return x


# ------------------------------ fused FFN kernel ------------------------------

def _ffn_kernel(seed_ref, x_ref, w1_ref, b1_ref, w2_ref, b2_ref, o_ref, acc_ref,
                *, p, training, d_ff, tm, tf):
    i = pl.program_id(0)            # row-block index
    j = pl.program_id(1)            # d_ff-block index (reduction axis)

    @pl.when(j == 0)
    def _():
        acc_ref[...] = jnp.zeros_like(acc_ref)

    x = x_ref[...]

    # linear_1 tile (+ bias) + relu, f32 accumulation on the MXU
    h = jnp.dot(x, w1_ref[...], preferred_element_type=jnp.float32)
    h = h + b1_ref[...].astype(jnp.float32)
    h = jnp.maximum(h, jnp.float32(0.0))

    if training and p > 0.0:
        # Inverted dropout.  Mask = hash(global element index, seed); identical
        # regardless of tiling, no TPU-only PRNG primitives needed.
        row = jax.lax.broadcasted_iota(jnp.int32, h.shape, 0) + i * tm
        col = jax.lax.broadcasted_iota(jnp.int32, h.shape, 1) + j * tf
        idx = row.astype(jnp.uint32) * jnp.uint32(d_ff) + col.astype(jnp.uint32)
        seed_vec = jnp.full(h.shape, seed_ref[0], dtype=jnp.int32).astype(jnp.uint32)
        u = _hash_u32(idx ^ seed_vec)
        thresh = jnp.uint32(min(int(p * 4294967296.0), 4294967295))
        keep = u >= thresh
        # all dropout math in f32 (v5e VPU has no bf16 path); cast once below
        h = jnp.where(keep, h * jnp.float32(1.0 / (1.0 - p)), jnp.float32(0.0))

    # linear_2 partial product for this d_ff slice, accumulated across j
    acc_ref[...] += jnp.dot(h.astype(x.dtype), w2_ref[...],
                            preferred_element_type=jnp.float32)

    @pl.when(j == pl.num_programs(1) - 1)
    def _():
        out = acc_ref[...] + b2_ref[...].astype(jnp.float32)
        o_ref[...] = out.astype(o_ref.dtype)


def feed_forward_block(x, w1, b1, w2, b2, *, dropout_p=0.0, training=False,
                       seed=0, row_tile=256, ff_tile=512):
    """Fused Pallas FeedForwardBlock forward: linear2(dropout(relu(linear1(x))))."""
    orig_shape = x.shape
    d_model = orig_shape[-1]
    d_ff = w1.shape[1]
    assert w1.shape == (d_model, d_ff)
    assert b1.shape == (d_ff,)
    assert w2.shape == (d_ff, d_model)
    assert b2.shape == (d_model,)

    x2 = x.reshape(-1, d_model)
    m = x2.shape[0]

    # Row tile: as large as practical (amortizes ~0.35 us/grid-step overhead),
    # multiple of 8 sublanes; pad rows, slice off afterwards.
    tm = min(row_tile, _round_up(m, 8))
    m_pad = _round_up(m, tm)
    if m_pad != m:
        x2 = jnp.pad(x2, ((0, m_pad - m), (0, 0)))

    # d_ff tile: multiple of 128 lanes, or the full d_ff.
    tf = ff_tile if (d_ff % ff_tile == 0) else d_ff

    grid = (m_pad // tm, d_ff // tf)

    b1_2 = b1.reshape(1, d_ff)
    b2_2 = b2.reshape(1, d_model)
    seed_arr = jnp.asarray([int(seed) & 0x7FFFFFFF], dtype=jnp.int32)

    kernel = functools.partial(_ffn_kernel, p=float(dropout_p),
                               training=bool(training), d_ff=d_ff, tm=tm, tf=tf)

    out = pl.pallas_call(
        kernel,
        out_shape=jax.ShapeDtypeStruct((m_pad, d_model), x.dtype),
        grid=grid,
        in_specs=[
            pl.BlockSpec(memory_space=pltpu.MemorySpace.SMEM),    # seed (1,)
            pl.BlockSpec((tm, d_model), lambda i, j: (i, 0)),     # x rows
            pl.BlockSpec((d_model, tf), lambda i, j: (0, j)),     # w1 column slab
            pl.BlockSpec((1, tf), lambda i, j: (0, j)),           # b1 slice
            pl.BlockSpec((tf, d_model), lambda i, j: (j, 0)),     # w2 row slab
            pl.BlockSpec((1, d_model), lambda i, j: (0, 0)),      # b2
        ],
        out_specs=pl.BlockSpec((tm, d_model), lambda i, j: (i, 0)),
        scratch_shapes=[pltpu.VMEM((tm, d_model), jnp.float32)],  # f32 accumulator
        compiler_params=pltpu.CompilerParams(
            dimension_semantics=("parallel", "arbitrary"),
            vmem_limit_bytes=48 * 1024 * 1024,   # headroom on v7x's 64 MiB VMEM
        ),
    )(seed_arr, x2, w1, b1_2, w2, b2_2)

    return out[:m].reshape(orig_shape)


# ----------------------------------- demo --------------------------------------

if __name__ == "__main__":
    B, S, D_MODEL, D_FF = 2, 8, 128, 256
    DROPOUT = 0.1

    key = jax.random.PRNGKey(0)
    kx, kw1, kb1, kw2, kb2 = jax.random.split(key, 5)
    x = jax.random.normal(kx, (B, S, D_MODEL), dtype=jnp.float32)
    w1 = jax.random.normal(kw1, (D_MODEL, D_FF), dtype=jnp.float32) * 0.05
    b1 = jax.random.normal(kb1, (D_FF,), dtype=jnp.float32) * 0.05
    w2 = jax.random.normal(kw2, (D_FF, D_MODEL), dtype=jnp.float32) * 0.05
    b2 = jax.random.normal(kb2, (D_MODEL,), dtype=jnp.float32) * 0.05

    # eval mode (dropout = identity): deterministic, verified against pure JAX
    out_eval = feed_forward_block(x, w1, b1, w2, b2,
                                  dropout_p=DROPOUT, training=False)
    out_eval = jax.block_until_ready(out_eval)

    h_ref = jnp.maximum(jnp.dot(x, w1) + b1, 0.0)
    ref = jnp.dot(h_ref, w2) + b2
    assert jnp.allclose(out_eval, ref, atol=1e-4, rtol=1e-4), "mismatch vs reference"

    # training mode: exercises the fused in-kernel dropout path
    # TODO(synk): mask matches torch.nn.Dropout in distribution (Bernoulli(1-p),
    # 1/(1-p) scaling), not bit-for-bit with torch's RNG stream.
    out_train = feed_forward_block(x, w1, b1, w2, b2,
                                   dropout_p=DROPOUT, training=True, seed=1234)
    out_train = jax.block_until_ready(out_train)
    assert out_train.shape == x.shape
    assert bool(jnp.all(jnp.isfinite(out_train)))

    print("KERNEL_OK")
</pallas_src>

<mosaic_0001>
module attributes {stable_mosaic.version = 11 : i64} {
  func.func @_ffn_kernel(%arg0: i32, %arg1: i32, %arg2: memref<1xi32, #tpu.memory_space<smem>>, %arg3: memref<16x128xf32, #tpu.memory_space<vmem>>, %arg4: memref<128x256xf32, #tpu.memory_space<vmem>>, %arg5: memref<1x256xf32, #tpu.memory_space<vmem>>, %arg6: memref<256x128xf32, #tpu.memory_space<vmem>>, %arg7: memref<1x128xf32, #tpu.memory_space<vmem>>, %arg8: memref<16x128xf32, #tpu.memory_space<vmem>>, %arg9: memref<16x128xf32, #tpu.memory_space<vmem>>) attributes {dimension_semantics = [#tpu.dimension_semantics<parallel>, #tpu.dimension_semantics<arbitrary>], iteration_bounds = array<i64: 1, 1>, scalar_prefetch = 0 : i64, scratch_operands = 1 : i64, tpu.core_type = #tpu.core_type<tc>, window_params = [{transform_indices = @transform_0, window_bounds = array<i64: 1>}, {transform_indices = @transform_1, window_bounds = array<i64: 16, 128>}, {transform_indices = @transform_2, window_bounds = array<i64: 128, 256>}, {transform_indices = @transform_3, window_bounds = array<i64: 1, 256>}, {transform_indices = @transform_4, window_bounds = array<i64: 256, 128>}, {pipeline_mode = #tpu.pipeline_mode<synchronous>, transform_indices = @transform_5, window_bounds = array<i64: 1, 128>}, {transform_indices = @transform_6, window_bounds = array<i64: 16, 128>}]} {
    %c0_i32 = arith.constant 0 : i32
    %0 = arith.cmpi eq, %arg1, %c0_i32 : i32
    %1 = arith.extui %0 : i1 to i32
    %c0_i32_0 = arith.constant 0 : i32
    %2 = arith.cmpi ne, %1, %c0_i32_0 : i32
    scf.if %2 {
      %cst_16 = arith.constant 0.000000e+00 : f32
      %19 = vector.broadcast %cst_16 : f32 to vector<16x128xf32>
      %c0_17 = arith.constant 0 : index
      %c0_18 = arith.constant 0 : index
      %20 = vector.load %arg9[%c0_17, %c0_18] : memref<16x128xf32, #tpu.memory_space<vmem>>, vector<16x128xf32>
      tpu.vector_store %arg9[%c0_17, %c0_18], %19 {strides = array<i32>} : memref<16x128xf32, #tpu.memory_space<vmem>>, vector<16x128xf32>,
    } else {
    }
    %c0 = arith.constant 0 : index
    %c0_1 = arith.constant 0 : index
    %3 = vector.load %arg3[%c0, %c0_1] : memref<16x128xf32, #tpu.memory_space<vmem>>, vector<16x128xf32>
    %c0_2 = arith.constant 0 : index
    %c0_3 = arith.constant 0 : index
    %4 = vector.load %arg4[%c0_2, %c0_3] : memref<128x256xf32, #tpu.memory_space<vmem>>, vector<128x256xf32>
    %cst = arith.constant dense<0.000000e+00> : vector<16x256xf32>
    %5 = tpu.matmul %3, %4, %cst {dimension_numbers = #tpu.dot_dimension_numbers<[1], [0], [0], [1], [0, 0, 1, 1], [], []>} : vector<16x128xf32>, vector<128x256xf32>, vector<16x256xf32> -> vector<16x256xf32>
    %c0_4 = arith.constant 0 : index
    %c0_5 = arith.constant 0 : index
    %6 = vector.load %arg5[%c0_4, %c0_5] : memref<1x256xf32, #tpu.memory_space<vmem>>, vector<1x256xf32>
    %7 = vector.broadcast %6 : vector<1x256xf32> to vector<16x256xf32>
    %8 = arith.addf %5, %7 : vector<16x256xf32>
    %cst_6 = arith.constant 0.000000e+00 : f32
    %9 = vector.broadcast %cst_6 : f32 to vector<16x256xf32>
    %10 = arith.maximumf %8, %9 : vector<16x256xf32>
    %c0_7 = arith.constant 0 : index
    %c0_8 = arith.constant 0 : index
    %11 = vector.load %arg9[%c0_7, %c0_8] : memref<16x128xf32, #tpu.memory_space<vmem>>, vector<16x128xf32>
    %c0_9 = arith.constant 0 : index
    %c0_10 = arith.constant 0 : index
    %12 = vector.load %arg6[%c0_9, %c0_10] : memref<256x128xf32, #tpu.memory_space<vmem>>, vector<256x128xf32>
    %cst_11 = arith.constant dense<0.000000e+00> : vector<16x128xf32>
    %13 = tpu.matmul %10, %12, %cst_11 {dimension_numbers = #tpu.dot_dimension_numbers<[1], [0], [0], [1], [0, 0, 1, 1], [], []>} : vector<16x256xf32>, vector<256x128xf32>, vector<16x128xf32> -> vector<16x128xf32>
    %14 = arith.addf %11, %13 : vector<16x128xf32>
    %c0_12 = arith.constant 0 : index
    %c0_13 = arith.constant 0 : index
    %15 = vector.load %arg9[%c0_12, %c0_13] : memref<16x128xf32, #tpu.memory_space<vmem>>, vector<16x128xf32>
    tpu.vector_store %arg9[%c0_12, %c0_13], %14 {strides = array<i32>} : memref<16x128xf32, #tpu.memory_space<vmem>>, vector<16x128xf32>,
    %c0_i32_14 = arith.constant 0 : i32
    %16 = arith.cmpi eq, %arg1, %c0_i32_14 : i32
    %17 = arith.extui %16 : i1 to i32
    %c0_i32_15 = arith.constant 0 : i32
    %18 = arith.cmpi ne, %17, %c0_i32_15 : i32
    scf.if %18 {
      %c0_16 = arith.constant 0 : index
      %c0_17 = arith.constant 0 : index
      %19 = vector.load %arg9[%c0_16, %c0_17] : memref<16x128xf32, #tpu.memory_space<vmem>>, vector<16x128xf32>
      %c0_18 = arith.constant 0 : index
      %c0_19 = arith.constant 0 : index
      %20 = vector.load %arg7[%c0_18, %c0_19] : memref<1x128xf32, #tpu.memory_space<vmem>>, vector<1x128xf32>
      %21 = vector.broadcast %20 : vector<1x128xf32> to vector<16x128xf32>
      %22 = arith.addf %19, %21 : vector<16x128xf32>
      %c0_20 = arith.constant 0 : index
      %c0_21 = arith.constant 0 : index
      %23 = vector.load %arg8[%c0_20, %c0_21] : memref<16x128xf32, #tpu.memory_space<vmem>>, vector<16x128xf32>
      tpu.vector_store %arg8[%c0_20, %c0_21], %22 {strides = array<i32>} : memref<16x128xf32, #tpu.memory_space<vmem>>, vector<16x128xf32>,
    } else {
    }
    return
  }
  func.func @transform_0(%arg0: i32, %arg1: i32) -> i32 {
    %c0_i32 = arith.constant 0 : i32
    %c0_i32_0 = arith.constant 0 : i32
    return %c0_i32 : i32
  }
  func.func @transform_1(%arg0: i32, %arg1: i32) -> (i32, i32) {
    %c0_i32 = arith.constant 0 : i32
    %c0_i32_0 = arith.constant 0 : i32
    return %arg0, %c0_i32 : i32, i32
  }
  func.func @transform_2(%arg0: i32, %arg1: i32) -> (i32, i32) {
    %c0_i32 = arith.constant 0 : i32
    %c0_i32_0 = arith.constant 0 : i32
    return %c0_i32, %arg1 : i32, i32
  }
  func.func @transform_3(%arg0: i32, %arg1: i32) -> (i32, i32) {
    %c0_i32 = arith.constant 0 : i32
    %c0_i32_0 = arith.constant 0 : i32
    return %c0_i32, %arg1 : i32, i32
  }
  func.func @transform_4(%arg0: i32, %arg1: i32) -> (i32, i32) {
    %c0_i32 = arith.constant 0 : i32
    %c0_i32_0 = arith.constant 0 : i32
    return %arg1, %c0_i32 : i32, i32
  }
  func.func @transform_5(%arg0: i32, %arg1: i32) -> (i32, i32) {
    %c0_i32 = arith.constant 0 : i32
    %c0_i32_0 = arith.constant 0 : i32
    %c0_i32_1 = arith.constant 0 : i32
    return %c0_i32, %c0_i32_0 : i32, i32
  }
  func.func @transform_6(%arg0: i32, %arg1: i32) -> (i32, i32) {
    %c0_i32 = arith.constant 0 : i32
    %c0_i32_0 = arith.constant 0 : i32
    return %arg0, %c0_i32 : i32, i32
  }
}

</mosaic_0001>

<llo_original>
// kernel: tpu_custom_call.1
$region0: #{tpu_custom_call.1}
  #allocation0 [shape = 'u32[]', space=smem, size = 0x4, offset = 0x4, fixed_abs, tag = 'smem constant byte address 0x4 - core index']
  #allocation1 [shape = 'u32[72,128]{1,0:T(1,128)}', space=vmem, size = 0x9000, scoped, tag = 'internal scratch']
  #allocation2 [shape = 'f32[16,128]{1,0:T(8,128)}', space=vmem, size = 0x2000, scoped, tag = 'scratch operand']
  #allocation3 [shape = 's32[1]{0:T(128)S(6)}', space=smem, size = 0x200, scoped, tag = 'scoped memory for tpu_custom_call.1']
  %s0 = inlined_call_operand.<no memory space> [shape: s32[1], index: 0, kind: input, shape index: {}]
  %s1 = inlined_call_operand.hbm [shape: f32[16,128], index: 1, kind: input, shape index: {}]
  %s2 = inlined_call_operand.hbm [shape: f32[128,256], index: 2, kind: input, shape index: {}]
  %s3 = inlined_call_operand.vmem [shape: f32[1,256], index: 3, kind: input, shape index: {}]
  %s4 = inlined_call_operand.hbm [shape: f32[256,128], index: 4, kind: input, shape index: {}]
  %s5 = inlined_call_operand.vmem [shape: f32[1,128], index: 5, kind: input, shape index: {}]
  %s6 = inlined_call_operand.hbm [shape: f32[16,128], index: 6, kind: output, shape index: {}]
  %s7 = sld [smem:[#allocation0]]
  $region54: #{tpu_custom_call.1} parent=0
    _
  %s9 = ssub.s32 1, %s7
  %s10 = scalar_select 0, %s9, %s7
  %11 = sst [smem:[#allocation3]] %s0
  $region1: #{tpu_custom_call.1} parent=0
    #allocation4 [shape = 'u8[8192]{0}', space=vmem, size = 0x2000, scoped, tag = 'input window, operand 1, single buffered']
    #allocation5 [shape = 's32[1]{0}', space=sflag, size = 0x4, scoped, tag = 'scoped memory for tpu_custom_call.1']
    #allocation6 [shape = 's32[1]{0}', space=sflag, size = 0x4, scoped, tag = 'scoped memory for tpu_custom_call.1']
    #allocation7 [shape = 'u8[131072]{0}', space=vmem, size = 0x20000, scoped, tag = 'input window, operand 2, single buffered']
    #allocation8 [shape = 's32[1]{0}', space=sflag, size = 0x4, scoped, tag = 'scoped memory for tpu_custom_call.1']
    #allocation9 [shape = 'u8[131072]{0}', space=vmem, size = 0x20000, scoped, tag = 'input window, operand 4, single buffered']
    #allocation10 [shape = 'u8[8192]{0}', space=vmem, size = 0x2000, scoped, tag = 'output window, operand 0, single buffered']
    %12 = vsyncpa [#allocation5], 0
    %13 = vsyncpa [#allocation8], 0
    %14 = vsyncpa [#allocation6], 0
    // Predicated region
    $region2: #{tpu_custom_call.1} parent=1 // pred_check
      _
    $region3: #{tpu_custom_call.1} parent=1 // pred_check_branch
      %16 = sbr.rel (0) target = $region5
    $region4: #{tpu_custom_call.1} parent=1 // pred_region
      _
    $region5: #{tpu_custom_call.1} parent=1 // pred_fallthru
      _
    // Predicated region
    $region6: #{tpu_custom_call.1} parent=1 // pred_check
      _
    $region7: #{tpu_custom_call.1} parent=1 // pred_check_branch
      %18 = sbr.rel (0) target = $region9
    $region8: #{tpu_custom_call.1} parent=1 // pred_region
      %20 = vsyncadd [#allocation5], 0
      %s21 = sshll.u32 %s1, 4
      %s22 = int_to_ptr.hbm [resolvable:$true] %s21
      %s23 = sshll.u32 [#allocation4], 4
      %s24 = int_to_ptr.vmem [resolvable:$true] %s23
      %29 = dma.hbm_to_vmem [thread:$0]  %s22, 256, %s24, [#allocation5], 128, 128, 8
    $region9: #{tpu_custom_call.1} parent=1 // pred_fallthru
      _
    // Predicated region
    $region10: #{tpu_custom_call.1} parent=1 // pred_check
      _
    $region11: #{tpu_custom_call.1} parent=1 // pred_check_branch
      %31 = sbr.rel (0) target = $region13
    $region12: #{tpu_custom_call.1} parent=1 // pred_region
      %33 = vsyncadd [#allocation8], 0
      %s34 = sshll.u32 %s2, 4
      %s35 = int_to_ptr.hbm [resolvable:$true] %s34
      %s36 = sshll.u32 [#allocation7], 4
      %s37 = int_to_ptr.vmem [resolvable:$true] %s36
      %42 = dma.hbm_to_vmem [thread:$0]  %s35, 4096, %s37, [#allocation8], 256, 256, 16
    $region13: #{tpu_custom_call.1} parent=1 // pred_fallthru
      _
    // Predicated region
    $region14: #{tpu_custom_call.1} parent=1 // pred_check
      _
    $region15: #{tpu_custom_call.1} parent=1 // pred_check_branch
      %44 = sbr.rel (0) target = $region17
    $region16: #{tpu_custom_call.1} parent=1 // pred_region
      _
    $region17: #{tpu_custom_call.1} parent=1 // pred_fallthru
      _
    // Predicated region
    $region18: #{tpu_custom_call.1} parent=1 // pred_check
      _
    $region19: #{tpu_custom_call.1} parent=1 // pred_check_branch
      %46 = sbr.rel (0) target = $region21
    $region20: #{tpu_custom_call.1} parent=1 // pred_region
      %48 = vsyncadd [#allocation8], 0
      %s49 = sshll.u32 %s4, 4
      %s50 = int_to_ptr.hbm [resolvable:$true] %s49
      %s51 = sshll.u32 [#allocation9], 4
      %s52 = int_to_ptr.vmem [resolvable:$true] %s51
      %57 = dma.hbm_to_vmem [thread:$0]  %s50, 4096, %s52, [#allocation8], 128, 128, 8
    $region21: #{tpu_custom_call.1} parent=1 // pred_fallthru
      _
    // Predicated region
    $region22: #{tpu_custom_call.1} parent=1 // pred_check
      _
    $region23: #{tpu_custom_call.1} parent=1 // pred_check_branch
      %59 = sbr.rel (0) target = $region25
    $region24: #{tpu_custom_call.1} parent=1 // pred_region
      _
    $region25: #{tpu_custom_call.1} parent=1 // pred_fallthru
      _
    // Predicated region
    $region26: #{tpu_custom_call.1} parent=1 // pred_check
      _
    $region27: #{tpu_custom_call.1} parent=1 // pred_check_branch
      %61 = sbr.rel (0) target = $region29
    $region28: #{tpu_custom_call.1} parent=1 // pred_region
      %63 = dma.done [#allocation5], 256
    $region29: #{tpu_custom_call.1} parent=1 // pred_fallthru
      _
    // Predicated region
    $region30: #{tpu_custom_call.1} parent=1 // pred_check
      _
    $region31: #{tpu_custom_call.1} parent=1 // pred_check_branch
      %65 = sbr.rel (0) target = $region33
    $region32: #{tpu_custom_call.1} parent=1 // pred_region
      %67 = dma.done [#allocation8], 4096
    $region33: #{tpu_custom_call.1} parent=1 // pred_fallthru
      _
    // Predicated region
    $region34: #{tpu_custom_call.1} parent=1 // pred_check
      _
    $region35: #{tpu_custom_call.1} parent=1 // pred_check_branch
      %69 = sbr.rel (0) target = $region37
    $region36: #{tpu_custom_call.1} parent=1 // pred_region
      %71 = dma.done [#allocation8], 4096
    $region37: #{tpu_custom_call.1} parent=1 // pred_fallthru
      _
    %p72 = scmp.eq.s32.totalorder 0, 0
    // Predicated region
    $region38: #{tpu_custom_call.1} parent=1 // pred_check
      %p73 = pneg %p72
    $region39: #{tpu_custom_call.1} parent=1 // pred_check_branch
      %75 = sbr.rel (%p73) target = $region41
    $region40: #{tpu_custom_call.1} parent=1 // pred_region
      %76 = vst [vmem:[#allocation2] sm:$0xff] 0.0
      %77 = vst [vmem:[#allocation2 + $0x8] sm:$0xff] 0.0
    $region41: #{tpu_custom_call.1} parent=1 // pred_fallthru
      _
    %v78 = vld [vmem:[#allocation4] sm:$0xff]
    %v79 = vld [vmem:[#allocation4 + $0x8] sm:$0xff]
    %v80 = vld [vmem:[#allocation7] sm:$0xff]
    %v81 = vld [vmem:[#allocation7 + $0x8] sm:$0xff]
    %v82 = vld [vmem:[#allocation7 + $0x10] sm:$0xff]
    %v83 = vld [vmem:[#allocation7 + $0x18] sm:$0xff]
    %v84 = vld [vmem:[#allocation7 + $0x20] sm:$0xff]
    %v85 = vld [vmem:[#allocation7 + $0x28] sm:$0xff]
    %v86 = vld [vmem:[#allocation7 + $0x30] sm:$0xff]
    %v87 = vld [vmem:[#allocation7 + $0x38] sm:$0xff]
    %v88 = vld [vmem:[#allocation7 + $0x40] sm:$0xff]
    %v89 = vld [vmem:[#allocation7 + $0x48] sm:$0xff]
    %v90 = vld [vmem:[#allocation7 + $0x50] sm:$0xff]
    %v91 = vld [vmem:[#allocation7 + $0x58] sm:$0xff]
    %v92 = vld [vmem:[#allocation7 + $0x60] sm:$0xff]
    %v93 = vld [vmem:[#allocation7 + $0x68] sm:$0xff]
    %v94 = vld [vmem:[#allocation7 + $0x70] sm:$0xff]
    %v95 = vld [vmem:[#allocation7 + $0x78] sm:$0xff]
    %v96 = vld [vmem:[#allocation7 + $0x80] sm:$0xff]
    %v97 = vld [vmem:[#allocation7 + $0x88] sm:$0xff]
    %v98 = vld [vmem:[#allocation7 + $0x90] sm:$0xff]
    %v99 = vld [vmem:[#allocation7 + $0x98] sm:$0xff]
    %v100 = vld [vmem:[#allocation7 + $0xa0] sm:$0xff]
    %v101 = vld [vmem:[#allocation7 + $0xa8] sm:$0xff]
    %v102 = vld [vmem:[#allocation7 + $0xb0] sm:$0xff]
    %v103 = vld [vmem:[#allocation7 + $0xb8] sm:$0xff]
    %v104 = vld [vmem:[#allocation7 + $0xc0] sm:$0xff]
    %v105 = vld [vmem:[#allocation7 + $0xc8] sm:$0xff]
    %v106 = vld [vmem:[#allocation7 + $0xd0] sm:$0xff]
    %v107 = vld [vmem:[#allocation7 + $0xd8] sm:$0xff]
    %v108 = vld [vmem:[#allocation7 + $0xe0] sm:$0xff]
    %v109 = vld [vmem:[#allocation7 + $0xe8] sm:$0xff]
    %v110 = vld [vmem:[#allocation7 + $0xf0] sm:$0xff]
    %v111 = vld [vmem:[#allocation7 + $0xf8] sm:$0xff]
    %v112 = vld [vmem:[%s3] sm:$0x3]
    %v114 = vperm.slane %v112, 0
    %v115 = vperm.slane %v112, 1
    %118 = vmatpush.msra.mxu0 %v110
    %119 = vmatpush.msra.mxu0 %v108
    %120 = vmatpush.msra.mxu0 %v106
    %121 = vmatpush.msra.mxu0 %v104
    %122 = vmatpush.msra.mxu0 %v102
    %123 = vmatpush.msra.mxu0 %v100
    %124 = vmatpush.msra.mxu0 %v98
    %125 = vmatpush.msra.mxu0 %v96
    %126 = vmatpush.msra.mxu0 %v94
    %127 = vmatpush.msra.mxu0 %v92
    %128 = vmatpush.msra.mxu0 %v90
    %129 = vmatpush.msra.mxu0 %v88
    %130 = vmatpush.msra.mxu0 %v86
    %131 = vmatpush.msra.mxu0 %v84
    %132 = vmatpush.msra.mxu0 %v82
    %133 = vmatpush.msra.mxu0 %v80
    %134 = vmatmul.f32.gmra.mxu0 %v78
    %v135 = vpop.f32.mrf.mxu0
    %v136 = vadd.f32 %v114, %v135
    %137 = vmatmul.f32.gmra.mxu0 %v79
    %v138 = vpop.f32.mrf.mxu0
    %v139 = vadd.f32 %v114, %v138
    %140 = vdwg.mxu0
    %141 = vmatpush.msra.mxu0 %v111
    %142 = vmatpush.msra.mxu0 %v109
    %143 = vmatpush.msra.mxu0 %v107
    %144 = vmatpush.msra.mxu0 %v105
    %145 = vmatpush.msra.mxu0 %v103
    %146 = vmatpush.msra.mxu0 %v101
    %147 = vmatpush.msra.mxu0 %v99
    %148 = vmatpush.msra.mxu0 %v97
    %149 = vmatpush.msra.mxu0 %v95
    %150 = vmatpush.msra.mxu0 %v93
    %151 = vmatpush.msra.mxu0 %v91
    %152 = vmatpush.msra.mxu0 %v89
    %153 = vmatpush.msra.mxu0 %v87
    %154 = vmatpush.msra.mxu0 %v85
    %155 = vmatpush.msra.mxu0 %v83
    %156 = vmatpush.msra.mxu0 %v81
    %157 = vmatmul.f32.gmra.mxu0 %v78
    %v158 = vpop.f32.mrf.mxu0
    %v159 = vadd.f32 %v115, %v158
    %160 = vmatmul.f32.gmra.mxu0 %v79
    %v161 = vpop.f32.mrf.mxu0
    %v162 = vadd.f32 %v115, %v161
    %163 = vdwg.mxu0
    %v164 = vmax.f32 %v136, 0.0
    %v165 = vmax.f32 %v159, 0.0
    %v166 = vmax.f32 %v139, 0.0
    %v167 = vmax.f32 %v162, 0.0
    %v168 = vld [vmem:[#allocation2] sm:$0xff]
    %v169 = vld [vmem:[#allocation2 + $0x8] sm:$0xff]
    %v170 = vld [vmem:[#allocation9] sm:$0xff]
    %v171 = vld [vmem:[#allocation9 + $0x8] sm:$0xff]
    %v172 = vld [vmem:[#allocation9 + $0x10] sm:$0xff]
    %v173 = vld [vmem:[#allocation9 + $0x18] sm:$0xff]
    %v174 = vld [vmem:[#allocation9 + $0x20] sm:$0xff]
    %v175 = vld [vmem:[#allocation9 + $0x28] sm:$0xff]
    %v176 = vld [vmem:[#allocation9 + $0x30] sm:$0xff]
    %v177 = vld [vmem:[#allocation9 + $0x38] sm:$0xff]
    %v178 = vld [vmem:[#allocation9 + $0x40] sm:$0xff]
    %v179 = vld [vmem:[#allocation9 + $0x48] sm:$0xff]
    %v180 = vld [vmem:[#allocation9 + $0x50] sm:$0xff]
    %v181 = vld [vmem:[#allocation9 + $0x58] sm:$0xff]
    %v182 = vld [vmem:[#allocation9 + $0x60] sm:$0xff]
    %v183 = vld [vmem:[#allocation9 + $0x68] sm:$0xff]
    %v184 = vld [vmem:[#allocation9 + $0x70] sm:$0xff]
    %v185 = vld [vmem:[#allocation9 + $0x78] sm:$0xff]
    %v186 = vld [vmem:[#allocation9 + $0x80] sm:$0xff]
    %v187 = vld [vmem:[#allocation9 + $0x88] sm:$0xff]
    %v188 = vld [vmem:[#allocation9 + $0x90] sm:$0xff]
    %v189 = vld [vmem:[#allocation9 + $0x98] sm:$0xff]
    %v190 = vld [vmem:[#allocation9 + $0xa0] sm:$0xff]
    %v191 = vld [vmem:[#allocation9 + $0xa8] sm:$0xff]
    %v192 = vld [vmem:[#allocation9 + $0xb0] sm:$0xff]
    %v193 = vld [vmem:[#allocation9 + $0xb8] sm:$0xff]
    %v194 = vld [vmem:[#allocation9 + $0xc0] sm:$0xff]
    %v195 = vld [vmem:[#allocation9 + $0xc8] sm:$0xff]
    %v196 = vld [vmem:[#allocation9 + $0xd0] sm:$0xff]
    %v197 = vld [vmem:[#allocation9 + $0xd8] sm:$0xff]
    %v198 = vld [vmem:[#allocation9 + $0xe0] sm:$0xff]
    %v199 = vld [vmem:[#allocation9 + $0xe8] sm:$0xff]
    %v200 = vld [vmem:[#allocation9 + $0xf0] sm:$0xff]
    %v201 = vld [vmem:[#allocation9 + $0xf8] sm:$0xff]
    %202 = vmatpush.msra.mxu0 %v185
    %203 = vmatpush.msra.mxu0 %v184
    %204 = vmatpush.msra.mxu0 %v183
    %205 = vmatpush.msra.mxu0 %v182
    %206 = vmatpush.msra.mxu0 %v181
    %207 = vmatpush.msra.mxu0 %v180
    %208 = vmatpush.msra.mxu0 %v179
    %209 = vmatpush.msra.mxu0 %v178
    %210 = vmatpush.msra.mxu0 %v177
    %211 = vmatpush.msra.mxu0 %v176
    %212 = vmatpush.msra.mxu0 %v175
    %213 = vmatpush.msra.mxu0 %v174
    %214 = vmatpush.msra.mxu0 %v173
    %215 = vmatpush.msra.mxu0 %v172
    %216 = vmatpush.msra.mxu0 %v171
    %217 = vmatpush.msra.mxu0 %v170
    %218 = vmatmul.f32.gmra.mxu0 %v164
    %v219 = vpop.f32.mrf.mxu0
    %v220 = vadd.f32 0.0, %v219
    %221 = vmatmul.f32.gmra.mxu0 %v166
    %v222 = vpop.f32.mrf.mxu0
    %v223 = vadd.f32 0.0, %v222
    %224 = vdwg.mxu0
    %225 = vmatpush.msra.mxu0 %v201
    %226 = vmatpush.msra.mxu0 %v200
    %227 = vmatpush.msra.mxu0 %v199
    %228 = vmatpush.msra.mxu0 %v198
    %229 = vmatpush.msra.mxu0 %v197
    %230 = vmatpush.msra.mxu0 %v196
    %231 = vmatpush.msra.mxu0 %v195
    %232 = vmatpush.msra.mxu0 %v194
    %233 = vmatpush.msra.mxu0 %v193
    %234 = vmatpush.msra.mxu0 %v192
    %235 = vmatpush.msra.mxu0 %v191
    %236 = vmatpush.msra.mxu0 %v190
    %237 = vmatpush.msra.mxu0 %v189
    %238 = vmatpush.msra.mxu0 %v188
    %239 = vmatpush.msra.mxu0 %v187
    %240 = vmatpush.msra.mxu0 %v186
    %241 = vmatmul.f32.gmra.mxu0 %v165
    %v242 = vpop.f32.mrf.mxu0
    %v243 = vadd.f32 %v220, %v242
    %244 = vmatmul.f32.gmra.mxu0 %v167
    %v245 = vpop.f32.mrf.mxu0
    %v246 = vadd.f32 %v223, %v245
    %247 = vdwg.mxu0
    %v248 = vadd.f32 %v168, %v243
    %v249 = vadd.f32 %v169, %v246
    %250 = vst [vmem:[#allocation2] sm:$0xff] %v248
    %251 = vst [vmem:[#allocation2 + $0x8] sm:$0xff] %v249
    // Predicated region
    $region42: #{tpu_custom_call.1} parent=1 // pred_check
      %p252 = pneg %p72
    $region43: #{tpu_custom_call.1} parent=1 // pred_check_branch
      %254 = sbr.rel (%p252) target = $region45
    $region44: #{tpu_custom_call.1} parent=1 // pred_region
      %v255 = vld [vmem:[#allocation2] sm:$0xff]
      %v256 = vld [vmem:[#allocation2 + $0x8] sm:$0xff]
      %v257 = vld [vmem:[%s5] sm:$0x1]
      %v259 = vperm.slane %v257, 0
      %v261 = vadd.f32 %v255, %v259
      %v262 = vadd.f32 %v256, %v259
      %263 = vst [vmem:[#allocation10] sm:$0xff] %v261
      %264 = vst [vmem:[#allocation10 + $0x8] sm:$0xff] %v262
    $region45: #{tpu_custom_call.1} parent=1 // pred_fallthru
      _
    // Predicated region
    $region46: #{tpu_custom_call.1} parent=1 // pred_check
      _
    $region47: #{tpu_custom_call.1} parent=1 // pred_check_branch
      %266 = sbr.rel (0) target = $region49
    $region48: #{tpu_custom_call.1} parent=1 // pred_region
      %268 = vsyncadd [#allocation6], 0
      %s269 = sshll.u32 [#allocation10], 4
      %s270 = int_to_ptr.vmem [resolvable:$true] %s269
      %s271 = sshll.u32 %s6, 4
      %s272 = int_to_ptr.hbm [resolvable:$true] %s271
      %277 = dma.vmem_to_hbm [thread:$0]  %s270, 256, %s272, [#allocation6], 128, 128, 8
    $region49: #{tpu_custom_call.1} parent=1 // pred_fallthru
      _
    // Predicated region
    $region50: #{tpu_custom_call.1} parent=1 // pred_check
      _
    $region51: #{tpu_custom_call.1} parent=1 // pred_check_branch
      %279 = sbr.rel (0) target = $region53
    $region52: #{tpu_custom_call.1} parent=1 // pred_region
      %281 = dma.done [#allocation6], 256
    $region53: #{tpu_custom_call.1} parent=1 // pred_fallthru
      _
    %282 = vsyncpa [#allocation5], 1
    %283 = vsyncpa [#allocation8], 1
    %284 = vsyncpa [#allocation6], 1

</llo_original>
